<compile_context>
chip_gen: v5e
topology: v5e:2x2
jax: 0.10.0
libtpu: 0.0.40
codegen_flags: <defaults>
</compile_context>

<pallas_src>
import functools

import jax
import jax.numpy as jnp
from jax.experimental import pallas as pl
from jax.experimental.pallas import tpu as pltpu


def _imod(x, n):
    """x mod n for non-negative int32 vectors (bitwise AND when n is a pow2)."""
    if n & (n - 1) == 0:
        return jnp.bitwise_and(x, n - 1)
    return jax.lax.rem(x, n)


# ---------------------------------------------------------------------------
# Fused conv + bias + squash kernel (one batch element per grid step)
# ---------------------------------------------------------------------------

def _primary_caps_kernel(p_ref, w_ref, b_ref, o_ref, *, caps_dim):
    # p_ref: (1, K, P)   im2col patches of batch b; feature order (c, kh, kw)
    # w_ref: (Cout, K)   conv weight flattened over (c, kh, kw)
    # b_ref: (Cout, 1)   conv bias (per output channel == per row)
    # o_ref: (Cout, P)   squashed capsules for batch b, row-major == flat NCHW
    P = p_ref.shape[-1]
    D = caps_dim

    w = w_ref[...]
    bias = b_ref[...]                                   # (Cout, 1) -> broadcast lanes

    # Conv as matmul directly in channel-major (NCHW) orientation: (Cout, P).
    x = jnp.dot(w, p_ref[0], preferred_element_type=jnp.float32) + bias

    # Iotas built once, reused for every shift mask and the phase select.
    col = jax.lax.broadcasted_iota(jnp.int32, x.shape, 1)
    row = jax.lax.broadcasted_iota(jnp.int32, x.shape, 0)
    phase = _imod(row * P + col, D)                     # flat index mod D

    def shift_flat(arr, k):
        # shift_flat(arr, k)[row, c] == arr at flat index (row*P + c + k):
        # a lane roll within the row plus a one-row carry.  Wrapped values at
        # the block edges are never selected because (Cout * P) % D == 0, so
        # capsules never straddle the per-batch block boundary.
        if k == 0:
            return arr
        r1 = jnp.roll(arr, -k, axis=1)                  # within-row lane roll
        r2 = jnp.roll(r1, -1 if k > 0 else 1, axis=0)   # carry into adjacent row
        keep = (col < P - k) if k > 0 else (col >= -k)
        return jnp.where(keep, r1, r2)

    # ---- capsule squash ----------------------------------------------------
    q = x * x

    # Sliding-window sum of length D along the flat order (log-step doubling
    # plus a linear remainder for non-power-of-2 D).  Only q, s, and one
    # shifted temporary are live at any point.
    s = q
    win = 1
    while win * 2 <= D:
        s = s + shift_flat(s, win)
        win *= 2
    for k in range(win, D):
        s = s + shift_flat(q, k)
    # s[i] == sum_{k=0}^{D-1} q[i+k]; valid wherever i is a capsule start.

    # Align the capsule-start sums to every phase: sq[i] = s[i - phase(i)].
    sq = s
    for r in range(1, D):
        sq = jnp.where(phase == r, shift_flat(s, -r), sq)

    # squash: scale * x / (||x|| + eps), divides fused into one.
    o_ref[...] = x * sq / ((1.0 + sq) * (jnp.sqrt(sq) + 1e-8))


# ---------------------------------------------------------------------------
# Wrapper
# ---------------------------------------------------------------------------

@functools.partial(jax.jit, static_argnames=("stride", "out_channels"))
def primary_caps_forward(x, weight, bias, *, stride, out_channels):
    """x: (B, Cin, H, W) float32; weight: (Cout, Cin, kh, kw); bias: (Cout,)."""
    B = x.shape[0]
    Cout, _, kh, kw = weight.shape
    D = out_channels
    assert Cout % D == 0, "conv channels must be a multiple of the capsule dim"

    # One-op im2col.  Output (B, Cin*kh*kw, Ho, Wo) has feature order (c, kh, kw)
    # -- identical to weight.reshape(Cout, -1) -- and is already in the (K, P)
    # orientation the kernel consumes, so only free reshapes follow.
    patches = jax.lax.conv_general_dilated_patches(
        x, (kh, kw), (stride, stride), padding="VALID",
        dimension_numbers=("NCHW", "OIHW", "NCHW"))
    K, Ho, Wo = patches.shape[1:]
    P = Ho * Wo
    assert D <= P, "capsule dim must not exceed one channel's spatial extent"
    assert (Cout * P) % D == 0, "capsules must not straddle a batch boundary"
    patches = patches.reshape(B, K, P)

    w_flat = weight.reshape(Cout, K)
    b_col = bias.reshape(Cout, 1)

    out_flat = pl.pallas_call(
        functools.partial(_primary_caps_kernel, caps_dim=D),
        out_shape=jax.ShapeDtypeStruct((B * Cout, P), jnp.float32),
        grid=(B,),
        in_specs=[
            pl.BlockSpec((1, K, P), lambda b: (b, 0, 0)),     # per-batch patches
            pl.BlockSpec((Cout, K), lambda b: (0, 0)),        # weight (resident)
            pl.BlockSpec((Cout, 1), lambda b: (0, 0)),        # bias (resident)
        ],
        out_specs=pl.BlockSpec((Cout, P), lambda b: (b, 0)),
        compiler_params=pltpu.CompilerParams(
            dimension_semantics=("parallel",)),
    )(patches, w_flat, b_col)

    # == out.contiguous().view(batch, -1, out_channels): free row-major reshape.
    return out_flat.reshape(B, -1, D)


# ---------------------------------------------------------------------------
# Pure-JAX reference (faithful to the PyTorch module)
# ---------------------------------------------------------------------------

def _reference(x, weight, bias, stride, out_channels):
    conv = jax.lax.conv_general_dilated(
        x, weight, window_strides=(stride, stride), padding="VALID",
        dimension_numbers=("NCHW", "OIHW", "NCHW"))
    conv = conv + bias.reshape(1, -1, 1, 1)
    out = conv.reshape(conv.shape[0], -1, out_channels)
    sq = jnp.sum(out * out, axis=-1, keepdims=True)
    return (sq / (1 + sq)) * out / (jnp.sqrt(sq) + 1e-8)


# ---------------------------------------------------------------------------
# Main
# ---------------------------------------------------------------------------

if __name__ == "__main__":
    # Module config: num_conv_units=8, in_channels=4, out_channels=4,
    # kernel_size=3, stride=2.  Input: (2, 4, 16, 16) NCHW.
    num_conv_units, in_channels, out_channels = 8, 4, 4
    kernel_size, stride = 3, 2
    conv_out_channels = num_conv_units * out_channels        # 32

    key = jax.random.PRNGKey(0)
    kx, kw_, kb = jax.random.split(key, 3)

    x = jax.random.normal(kx, (2, in_channels, 16, 16), dtype=jnp.float32)

    # Deterministic Conv2d-style (Kaiming-uniform bound) parameter init.
    fan_in = in_channels * kernel_size * kernel_size
    bound = 1.0 / jnp.sqrt(float(fan_in))
    weight = jax.random.uniform(
        kw_, (conv_out_channels, in_channels, kernel_size, kernel_size),
        minval=-bound, maxval=bound, dtype=jnp.float32)
    bias = jax.random.uniform(
        kb, (conv_out_channels,), minval=-bound, maxval=bound, dtype=jnp.float32)

    out = primary_caps_forward(x, weight, bias, stride=stride,
                               out_channels=out_channels)
    out = jax.block_until_ready(out)

    ref = _reference(x, weight, bias, stride, out_channels)
    assert out.shape == ref.shape == (
        2, conv_out_channels * 7 * 7 // out_channels, out_channels)
    assert jnp.max(jnp.abs(out - ref)) < 1e-4

    print("KERNEL_OK")
</pallas_src>

<mosaic_0001>
module attributes {stable_mosaic.version = 11 : i64} {
  func.func @_primary_caps_kernel(%arg0: i32, %arg1: memref<1x36x49xf32, #tpu.memory_space<vmem>>, %arg2: memref<32x36xf32, #tpu.memory_space<vmem>>, %arg3: memref<32x1xf32, #tpu.memory_space<vmem>>, %arg4: memref<32x49xf32, #tpu.memory_space<vmem>>) attributes {dimension_semantics = [#tpu.dimension_semantics<parallel>], iteration_bounds = array<i64: 2>, scalar_prefetch = 0 : i64, scratch_operands = 0 : i64, tpu.core_type = #tpu.core_type<tc>, window_params = [{transform_indices = @transform_0, window_bounds = array<i64: 1, 36, 49>}, {pipeline_mode = #tpu.pipeline_mode<synchronous>, transform_indices = @transform_1, window_bounds = array<i64: 32, 36>}, {pipeline_mode = #tpu.pipeline_mode<synchronous>, transform_indices = @transform_2, window_bounds = array<i64: 32, 1>}, {transform_indices = @transform_3, window_bounds = array<i64: 32, 49>}]} {
    %c0 = arith.constant 0 : index
    %c0_0 = arith.constant 0 : index
    %0 = vector.load %arg2[%c0, %c0_0] : memref<32x36xf32, #tpu.memory_space<vmem>>, vector<32x36xf32>
    %c0_1 = arith.constant 0 : index
    %c0_2 = arith.constant 0 : index
    %1 = vector.load %arg3[%c0_1, %c0_2] : memref<32x1xf32, #tpu.memory_space<vmem>>, vector<32x1xf32>
    %c0_3 = arith.constant 0 : index
    %c0_4 = arith.constant 0 : index
    %c0_5 = arith.constant 0 : index
    %2 = vector.load %arg1[%c0_3, %c0_4, %c0_5] : memref<1x36x49xf32, #tpu.memory_space<vmem>>, vector<1x36x49xf32>
    %3 = vector.shape_cast %2 : vector<1x36x49xf32> to vector<36x49xf32>
    %cst = arith.constant dense<0.000000e+00> : vector<32x49xf32>
    %4 = tpu.matmul %0, %3, %cst {dimension_numbers = #tpu.dot_dimension_numbers<[1], [0], [0], [1], [0, 0, 1, 1], [], []>} : vector<32x36xf32>, vector<36x49xf32>, vector<32x49xf32> -> vector<32x49xf32>
    %5 = vector.broadcast %1 : vector<32x1xf32> to vector<32x49xf32>
    %6 = arith.addf %4, %5 : vector<32x49xf32>
    %7 = tpu.iota {dimensions = array<i32: 1>} : vector<32x49xi32>
    %8 = tpu.iota {dimensions = array<i32: 0>} : vector<32x49xi32>
    %c49_i32 = arith.constant 49 : i32
    %9 = vector.broadcast %c49_i32 : i32 to vector<32x49xi32>
    %10 = arith.muli %8, %9 : vector<32x49xi32>
    %11 = arith.addi %10, %7 : vector<32x49xi32>
    %c3_i32 = arith.constant 3 : i32
    %12 = vector.broadcast %c3_i32 : i32 to vector<32x49xi32>
    %13 = arith.andi %11, %12 : vector<32x49xi32>
    %14 = arith.mulf %6, %6 : vector<32x49xf32>
    %15 = vector.extract_strided_slice %14 {offsets = [0, 1], sizes = [32, 48], strides = [1, 1]} : vector<32x49xf32> to vector<32x48xf32>
    %16 = vector.extract_strided_slice %14 {offsets = [0, 0], sizes = [32, 1], strides = [1, 1]} : vector<32x49xf32> to vector<32x1xf32>
    %17 = tpu.concatenate %15, %16 in 1 : vector<32x48xf32>, vector<32x1xf32> -> vector<32x49xf32>
    %18 = vector.extract_strided_slice %17 {offsets = [1, 0], sizes = [31, 49], strides = [1, 1]} : vector<32x49xf32> to vector<31x49xf32>
    %19 = vector.extract_strided_slice %17 {offsets = [0, 0], sizes = [1, 49], strides = [1, 1]} : vector<32x49xf32> to vector<1x49xf32>
    %20 = tpu.concatenate %18, %19 in 0 : vector<31x49xf32>, vector<1x49xf32> -> vector<32x49xf32>
    %c48_i32 = arith.constant 48 : i32
    %21 = vector.broadcast %c48_i32 : i32 to vector<32x49xi32>
    %22 = arith.cmpi slt, %7, %21 : vector<32x49xi32>
    %23 = arith.select %22, %17, %20 : vector<32x49xi1>, vector<32x49xf32>
    %24 = arith.addf %14, %23 : vector<32x49xf32>
    %25 = vector.extract_strided_slice %24 {offsets = [0, 2], sizes = [32, 47], strides = [1, 1]} : vector<32x49xf32> to vector<32x47xf32>
    %26 = vector.extract_strided_slice %24 {offsets = [0, 0], sizes = [32, 2], strides = [1, 1]} : vector<32x49xf32> to vector<32x2xf32>
    %27 = tpu.concatenate %25, %26 in 1 : vector<32x47xf32>, vector<32x2xf32> -> vector<32x49xf32>
    %28 = vector.extract_strided_slice %27 {offsets = [1, 0], sizes = [31, 49], strides = [1, 1]} : vector<32x49xf32> to vector<31x49xf32>
    %29 = vector.extract_strided_slice %27 {offsets = [0, 0], sizes = [1, 49], strides = [1, 1]} : vector<32x49xf32> to vector<1x49xf32>
    %30 = tpu.concatenate %28, %29 in 0 : vector<31x49xf32>, vector<1x49xf32> -> vector<32x49xf32>
    %c47_i32 = arith.constant 47 : i32
    %31 = vector.broadcast %c47_i32 : i32 to vector<32x49xi32>
    %32 = arith.cmpi slt, %7, %31 : vector<32x49xi32>
    %33 = arith.select %32, %27, %30 : vector<32x49xi1>, vector<32x49xf32>
    %34 = arith.addf %24, %33 : vector<32x49xf32>
    %c1_i32 = arith.constant 1 : i32
    %35 = vector.broadcast %c1_i32 : i32 to vector<32x49xi32>
    %36 = arith.cmpi eq, %13, %35 : vector<32x49xi32>
    %37 = vector.extract_strided_slice %34 {offsets = [0, 48], sizes = [32, 1], strides = [1, 1]} : vector<32x49xf32> to vector<32x1xf32>
    %38 = vector.extract_strided_slice %34 {offsets = [0, 0], sizes = [32, 48], strides = [1, 1]} : vector<32x49xf32> to vector<32x48xf32>
    %39 = tpu.concatenate %37, %38 in 1 : vector<32x1xf32>, vector<32x48xf32> -> vector<32x49xf32>
    %40 = vector.extract_strided_slice %39 {offsets = [31, 0], sizes = [1, 49], strides = [1, 1]} : vector<32x49xf32> to vector<1x49xf32>
    %41 = vector.extract_strided_slice %39 {offsets = [0, 0], sizes = [31, 49], strides = [1, 1]} : vector<32x49xf32> to vector<31x49xf32>
    %42 = tpu.concatenate %40, %41 in 0 : vector<1x49xf32>, vector<31x49xf32> -> vector<32x49xf32>
    %c1_i32_6 = arith.constant 1 : i32
    %43 = vector.broadcast %c1_i32_6 : i32 to vector<32x49xi32>
    %44 = arith.cmpi sge, %7, %43 : vector<32x49xi32>
    %45 = arith.select %44, %39, %42 : vector<32x49xi1>, vector<32x49xf32>
    %46 = arith.select %36, %45, %34 : vector<32x49xi1>, vector<32x49xf32>
    %c2_i32 = arith.constant 2 : i32
    %47 = vector.broadcast %c2_i32 : i32 to vector<32x49xi32>
    %48 = arith.cmpi eq, %13, %47 : vector<32x49xi32>
    %49 = vector.extract_strided_slice %34 {offsets = [0, 47], sizes = [32, 2], strides = [1, 1]} : vector<32x49xf32> to vector<32x2xf32>
    %50 = vector.extract_strided_slice %34 {offsets = [0, 0], sizes = [32, 47], strides = [1, 1]} : vector<32x49xf32> to vector<32x47xf32>
    %51 = tpu.concatenate %49, %50 in 1 : vector<32x2xf32>, vector<32x47xf32> -> vector<32x49xf32>
    %52 = vector.extract_strided_slice %51 {offsets = [31, 0], sizes = [1, 49], strides = [1, 1]} : vector<32x49xf32> to vector<1x49xf32>
    %53 = vector.extract_strided_slice %51 {offsets = [0, 0], sizes = [31, 49], strides = [1, 1]} : vector<32x49xf32> to vector<31x49xf32>
    %54 = tpu.concatenate %52, %53 in 0 : vector<1x49xf32>, vector<31x49xf32> -> vector<32x49xf32>
    %c2_i32_7 = arith.constant 2 : i32
    %55 = vector.broadcast %c2_i32_7 : i32 to vector<32x49xi32>
    %56 = arith.cmpi sge, %7, %55 : vector<32x49xi32>
    %57 = arith.select %56, %51, %54 : vector<32x49xi1>, vector<32x49xf32>
    %58 = arith.select %48, %57, %46 : vector<32x49xi1>, vector<32x49xf32>
    %c3_i32_8 = arith.constant 3 : i32
    %59 = vector.broadcast %c3_i32_8 : i32 to vector<32x49xi32>
    %60 = arith.cmpi eq, %13, %59 : vector<32x49xi32>
    %61 = vector.extract_strided_slice %34 {offsets = [0, 46], sizes = [32, 3], strides = [1, 1]} : vector<32x49xf32> to vector<32x3xf32>
    %62 = vector.extract_strided_slice %34 {offsets = [0, 0], sizes = [32, 46], strides = [1, 1]} : vector<32x49xf32> to vector<32x46xf32>
    %63 = tpu.concatenate %61, %62 in 1 : vector<32x3xf32>, vector<32x46xf32> -> vector<32x49xf32>
    %64 = vector.extract_strided_slice %63 {offsets = [31, 0], sizes = [1, 49], strides = [1, 1]} : vector<32x49xf32> to vector<1x49xf32>
    %65 = vector.extract_strided_slice %63 {offsets = [0, 0], sizes = [31, 49], strides = [1, 1]} : vector<32x49xf32> to vector<31x49xf32>
    %66 = tpu.concatenate %64, %65 in 0 : vector<1x49xf32>, vector<31x49xf32> -> vector<32x49xf32>
    %c3_i32_9 = arith.constant 3 : i32
    %67 = vector.broadcast %c3_i32_9 : i32 to vector<32x49xi32>
    %68 = arith.cmpi sge, %7, %67 : vector<32x49xi32>
    %69 = arith.select %68, %63, %66 : vector<32x49xi1>, vector<32x49xf32>
    %70 = arith.select %60, %69, %58 : vector<32x49xi1>, vector<32x49xf32>
    %71 = arith.mulf %6, %70 : vector<32x49xf32>
    %cst_10 = arith.constant 1.000000e+00 : f32
    %72 = vector.broadcast %cst_10 : f32 to vector<32x49xf32>
    %73 = arith.addf %72, %70 : vector<32x49xf32>
    %74 = math.sqrt %70 : vector<32x49xf32>
    %cst_11 = arith.constant 9.99999993E-9 : f32
    %75 = vector.broadcast %cst_11 : f32 to vector<32x49xf32>
    %76 = arith.addf %74, %75 : vector<32x49xf32>
    %77 = arith.mulf %73, %76 : vector<32x49xf32>
    %78 = arith.divf %71, %77 : vector<32x49xf32>
    %c0_12 = arith.constant 0 : index
    %c0_13 = arith.constant 0 : index
    %79 = vector.load %arg4[%c0_12, %c0_13] : memref<32x49xf32, #tpu.memory_space<vmem>>, vector<32x49xf32>
    tpu.vector_store %arg4[%c0_12, %c0_13], %78 {strides = array<i32>} : memref<32x49xf32, #tpu.memory_space<vmem>>, vector<32x49xf32>,
    return
  }
  func.func @transform_0(%arg0: i32) -> (i32, i32, i32) {
    %c0_i32 = arith.constant 0 : i32
    %c0_i32_0 = arith.constant 0 : i32
    %c0_i32_1 = arith.constant 0 : i32
    return %arg0, %c0_i32, %c0_i32_0 : i32, i32, i32
  }
  func.func @transform_1(%arg0: i32) -> (i32, i32) {
    %c0_i32 = arith.constant 0 : i32
    %c0_i32_0 = arith.constant 0 : i32
    %c0_i32_1 = arith.constant 0 : i32
    return %c0_i32, %c0_i32_0 : i32, i32
  }
  func.func @transform_2(%arg0: i32) -> (i32, i32) {
    %c0_i32 = arith.constant 0 : i32
    %c0_i32_0 = arith.constant 0 : i32
    %c0_i32_1 = arith.constant 0 : i32
    return %c0_i32, %c0_i32_0 : i32, i32
  }
  func.func @transform_3(%arg0: i32) -> (i32, i32) {
    %c0_i32 = arith.constant 0 : i32
    %c0_i32_0 = arith.constant 0 : i32
    return %arg0, %c0_i32 : i32, i32
  }
}

</mosaic_0001>

<llo_original>
// kernel: primary_caps_forward.1
$region0: #{primary_caps_forward.1}
  #allocation0 [shape = 'u32[]', space=smem, size = 0x4, offset = 0x4, fixed_abs, tag = 'smem constant byte address 0x4 - core index']
  #allocation1 [shape = 'u32[72,128]{1,0:T(1,128)}', space=vmem, size = 0x9000, scoped, tag = 'internal scratch']
  %s0 = inlined_call_operand.vmem [shape: f32[2,36,49], index: 0, kind: input, shape index: {}]
  %s1 = inlined_call_operand.vmem [shape: f32[32,36], index: 1, kind: input, shape index: {}]
  %s2 = inlined_call_operand.vmem [shape: f32[32,1], index: 2, kind: input, shape index: {}]
  %s3 = inlined_call_operand.vmem [shape: f32[64,49], index: 3, kind: output, shape index: {}]
  %s4 = sld [smem:[#allocation0]]
  $region45: #{primary_caps_forward.1} parent=0
    _
  %s6 = ssub.s32 1, %s4
  %s7 = scalar_select 0, %s6, %s4
  loop: start=0, step=1, limit=4
  $region2: #{primary_caps_forward.1} parent=0 // loop_pre_header
    _
  $region3: #{primary_caps_forward.1} parent=0 // loop_header
    %s9 = sphi 0, %s13
    %p10 = scmp.ge.s32.totalorder %s9, 4
    %s19 = sphi 0, %s21
    %s22 = sphi 0, %s19
    %s23 = sphi 0, %s22
    %s39 = sphi 0, %s23
    %s43 = sphi 0, %s43
    %s45 = sphi 0, %s43
    %s46 = sphi 0, %s45
    %s60 = sphi 0, %s46
    %s64 = sphi 0, %s64
    %s66 = sphi 0, %s64
    %s67 = sphi 0, %s66
    %s81 = sphi 0, %s67
    %s87 = sphi 0, %s89
    %s90 = sphi 0, %s87
    %s91 = sphi 0, %s90
    %s107 = sphi 0, %s91
  $region4: #{primary_caps_forward.1} parent=0 // loop_header_branch
    %12 = sbr.rel (%p10) target = $region8
  $region5: #{primary_caps_forward.1} parent=0 // loop_body
    %s14 = ssub.s32 %s9, 1
    %s15 = ssub.s32 %s9, 2
    %s16 = sadd.s32 %s9, 1
    %s17 = ssub.s32 %s9, %s16
    %p18 = scmp.eq.s32.totalorder %s17, 0
    %s20 = sadd.s32 %s19, 1
    %s21 = scalar_select %p18, %s19, %s20
    %p24 = pneg %p18
    %p25 = scmp.eq.s32.totalorder %s9, 1
    %p26 = por %p24, %p25
    %p27 = scmp.ne.s32.totalorder %s19, %s22
    %p28 = scmp.eq.s32.totalorder %s9, 0
    %p29 = por %p27, %p28
    %p30 = scmp.ne.s32.totalorder %s19, %s22
    %p31 = scmp.eq.s32.totalorder %s14, 1
    %p32 = por %p30, %p31
    %p33 = scmp.ne.s32.totalorder %s22, %s23
    %p34 = scmp.eq.s32.totalorder %s14, 0
    %p35 = por %p33, %p34
    %p36 = scmp.ne.s32.totalorder %s22, %s23
    %p37 = scmp.eq.s32.totalorder %s15, 1
    %p38 = por %p36, %p37
    %p40 = scmp.ne.s32.totalorder %s23, %s39
    %p41 = scmp.eq.s32.totalorder %s15, 0
    %p42 = por %p40, %p41
    %s44 = sadd.s32 %s43, 1
    %p47 = scmp.eq.s32.totalorder %s9, 1
    %p48 = scmp.ne.s32.totalorder %s43, %s45
    %p49 = scmp.eq.s32.totalorder %s9, 0
    %p50 = por %p48, %p49
    %p51 = scmp.ne.s32.totalorder %s43, %s45
    %p52 = scmp.eq.s32.totalorder %s14, 1
    %p53 = por %p51, %p52
    %p54 = scmp.ne.s32.totalorder %s45, %s46
    %p55 = scmp.eq.s32.totalorder %s14, 0
    %p56 = por %p54, %p55
    %p57 = scmp.ne.s32.totalorder %s45, %s46
    %p58 = scmp.eq.s32.totalorder %s15, 1
    %p59 = por %p57, %p58
    %p61 = scmp.ne.s32.totalorder %s46, %s60
    %p62 = scmp.eq.s32.totalorder %s15, 0
    %p63 = por %p61, %p62
    %s65 = sadd.s32 %s64, 1
    %p68 = scmp.eq.s32.totalorder %s9, 1
    %p69 = scmp.ne.s32.totalorder %s64, %s66
    %p70 = scmp.eq.s32.totalorder %s9, 0
    %p71 = por %p69, %p70
    %p72 = scmp.ne.s32.totalorder %s64, %s66
    %p73 = scmp.eq.s32.totalorder %s14, 1
    %p74 = por %p72, %p73
    %p75 = scmp.ne.s32.totalorder %s66, %s67
    %p76 = scmp.eq.s32.totalorder %s14, 0
    %p77 = por %p75, %p76
    %p78 = scmp.ne.s32.totalorder %s66, %s67
    %p79 = scmp.eq.s32.totalorder %s15, 1
    %p80 = por %p78, %p79
    %p82 = scmp.ne.s32.totalorder %s67, %s81
    %p83 = scmp.eq.s32.totalorder %s15, 0
    %p84 = por %p82, %p83
    %s85 = ssub.s32 %s9, %s16
    %p86 = scmp.eq.s32.totalorder %s85, 0
    %s88 = sadd.s32 %s87, 1
    %s89 = scalar_select %p86, %s87, %s88
    %p92 = pneg %p86
    %p93 = scmp.eq.s32.totalorder %s9, 1
    %p94 = por %p92, %p93
    %p95 = scmp.ne.s32.totalorder %s87, %s90
    %p96 = scmp.eq.s32.totalorder %s9, 0
    %p97 = por %p95, %p96
    %p98 = scmp.ne.s32.totalorder %s87, %s90
    %p99 = scmp.eq.s32.totalorder %s14, 1
    %p100 = por %p98, %p99
    %p101 = scmp.ne.s32.totalorder %s90, %s91
    %p102 = scmp.eq.s32.totalorder %s14, 0
    %p103 = por %p101, %p102
    %p104 = scmp.ne.s32.totalorder %s90, %s91
    %p105 = scmp.eq.s32.totalorder %s15, 1
    %p106 = por %p104, %p105
    %p108 = scmp.ne.s32.totalorder %s91, %s107
    %p109 = scmp.eq.s32.totalorder %s15, 0
    %p110 = por %p108, %p109
    %p111 = scmp.le.s32.totalorder 1, %s9
    %p112 = scmp.lt.s32.totalorder %s9, 3
    %p113 = pnand %p111, %p112
    %p114 = pneg %p113
    // Predicated region
    $region9: #{primary_caps_forward.1} parent=5 // pred_check
      _
    $region10: #{primary_caps_forward.1} parent=5 // pred_check_branch
      %116 = sbr.rel (%p113) target = $region12
    $region11: #{primary_caps_forward.1} parent=5 // pred_region
      %s117 = ssub.s32 %s9, 1
      // Predicated region
      $region13: #{primary_caps_forward.1} parent=11 // pred_check
        %p118 = pneg %p56
      $region14: #{primary_caps_forward.1} parent=11 // pred_check_branch
        %120 = sbr.rel (%p118) target = $region16
      $region15: #{primary_caps_forward.1} parent=11 // pred_region
        _
      $region16: #{primary_caps_forward.1} parent=11 // pred_fallthru
        _
      // Predicated region
      $region17: #{primary_caps_forward.1} parent=11 // pred_check
        %p121 = pneg %p77
      $region18: #{primary_caps_forward.1} parent=11 // pred_check_branch
        %123 = sbr.rel (%p121) target = $region20
      $region19: #{primary_caps_forward.1} parent=11 // pred_region
        _
      $region20: #{primary_caps_forward.1} parent=11 // pred_fallthru
        _
    $region12: #{primary_caps_forward.1} parent=5 // pred_fallthru
      _
    %p124 = scmp.lt.s32.totalorder %s9, 2
    // Predicated region
    $region21: #{primary_caps_forward.1} parent=5 // pred_check
      %p125 = pneg %p124
    $region22: #{primary_caps_forward.1} parent=5 // pred_check_branch
      %127 = sbr.rel (%p125) target = $region24
    $region23: #{primary_caps_forward.1} parent=5 // pred_region
      // Predicated region
      $region25: #{primary_caps_forward.1} parent=23 // pred_check
        %p128 = pneg %p29
      $region26: #{primary_caps_forward.1} parent=23 // pred_check_branch
        %130 = sbr.rel (%p128) target = $region28
      $region27: #{primary_caps_forward.1} parent=23 // pred_region
        %p131 = scmp.lt.s32.totalorder %s9, 1
        %s132 = scalar_select %p131, %s9, 1
        %s133 = smul.addr %s132, 5
        %s134 = smul.addr %s133, 8
        %s135 = scalar_lea.vmem %s0, %s134
      $region28: #{primary_caps_forward.1} parent=23 // pred_fallthru
        _
    $region24: #{primary_caps_forward.1} parent=5 // pred_fallthru
      _
    %p136 = scmp.le.s32.totalorder 1, %s9
    %p137 = scmp.lt.s32.totalorder %s9, 3
    %p138 = pnand %p136, %p137
    %p139 = pneg %p138
    // Predicated region
    $region29: #{primary_caps_forward.1} parent=5 // pred_check
      _
    $region30: #{primary_caps_forward.1} parent=5 // pred_check_branch
      %141 = sbr.rel (%p138) target = $region32
    $region31: #{primary_caps_forward.1} parent=5 // pred_region
      %s142 = ssub.s32 %s9, 1
      %p143 = scmp.lt.s32.totalorder %s14, 1
      %s144 = scalar_select %p143, %s14, 1
      %s145 = smul.addr %s144, 5
      %s146 = smul.addr %s145, 8
      %s147 = scalar_lea.vmem %s0, %s146
      %p148 = pneg %p35
      %p149 = pneg %p32
      %p150 = pneg %p56
      %p151 = pneg %p53
      %p152 = pneg %p77
      %p153 = pneg %p74
      %p154 = pneg %p103
      %p155 = pneg %p100
      %s156 = smul.u32 4, %s14
      %p157 = scmp.lt.s32.totalorder %s156, 7
      %s158 = scalar_select %p157, %s156, 7
      %s159 = smul.addr %s158, 8
      %s160 = scalar_lea.vmem %s3, %s159
      %p161 = scmp.lt.s32.totalorder %s14, 1
      %s162 = scalar_select %p161, %s14, 1
      %s163 = smul.addr %s162, 5
      %s164 = smul.addr %s163, 8
      %s165 = scalar_lea.vmem %s0, %s164
      %s166 = smul.u32 4, %s14
      %p167 = scmp.lt.s32.totalorder %s166, 7
      %s168 = scalar_select %p167, %s166, 7
      %s169 = smul.addr %s168, 8
      %s170 = scalar_lea.vmem %s3, %s169
      %s171 = smul.u32 4, %s14
      %v172 = vld [vmem:[%s1] sm:$0xff]
      %v173 = vld [vmem:[%s1 + $0x8] sm:$0xff]
      %v174 = vld [vmem:[%s1 + $0x10] sm:$0xff]
      %v175 = vld [vmem:[%s1 + $0x18] sm:$0xff]
      %v176 = vld [vmem:[%s2] sm:$0xff]
      %v177 = vld [vmem:[%s2 + $0x8] sm:$0xff]
      %v178 = vld [vmem:[%s2 + $0x10] sm:$0xff]
      %v179 = vld [vmem:[%s2 + $0x18] sm:$0xff]
      %v180 = vld [vmem:[%s165] sm:$0xff]
      %v181 = vld [vmem:[%s165 + $0x8] sm:$0xff]
      %v182 = vld [vmem:[%s165 + $0x10] sm:$0xff]
      %v183 = vld [vmem:[%s165 + $0x18] sm:$0xff]
      %v184 = vld [vmem:[%s165 + $0x20] sm:$0xf]
      %186 = vset.pattern.permute.xlu0 0
      %187 = vperm.xlu0 %186, %v176
      %v188 = vpop.permute.xlu0 %187
      %191 = vset.pattern.permute.xlu0 0
      %192 = vperm.xlu0 %191, %v177
      %v193 = vpop.permute.xlu0 %192
      %196 = vset.pattern.permute.xlu0 0
      %197 = vperm.xlu0 %196, %v178
      %v198 = vpop.permute.xlu0 %197
      %201 = vset.pattern.permute.xlu0 0
      %202 = vperm.xlu0 %201, %v179
      %v203 = vpop.permute.xlu0 %202
      %vm205 = vcmask 293888
      %v207 = vsel %vm205, %v172, 0
      %v210 = vsel %vm205, %v173, 0
      %v213 = vsel %vm205, %v174, 0
      %v216 = vsel %vm205, %v175, 0
      %vm218 = vcmask 1043456
      %v220 = vsel %vm218, %v184, 0
      %222 = vmatpush.msra.mxu0 0.0
      %223 = vmatpush.msra.mxu0 0.0
      %224 = vmatpush.msra.mxu0 0.0
      %225 = vmatpush.msra.mxu0 0.0
      %226 = vmatpush.msra.mxu0 0.0
      %227 = vmatpush.msra.mxu0 0.0
      %228 = vmatpush.msra.mxu0 0.0
      %229 = vmatpush.msra.mxu0 0.0
      %230 = vmatpush.msra.mxu0 0.0
      %231 = vmatpush.msra.mxu0 0.0
      %232 = vmatpush.msra.mxu0 0.0
      %233 = vmatpush.msra.mxu0 %v220
      %234 = vmatpush.msra.mxu0 %v183
      %235 = vmatpush.msra.mxu0 %v182
      %236 = vmatpush.msra.mxu0 %v181
      %237 = vmatpush.msra.mxu0 %v180
      %238 = vmatmul.f32.gmra.mxu0 %v207
      %v239 = vpop.f32.mrf.mxu0
      %v240 = vadd.f32 %v188, %v239
      %241 = vmatmul.f32.gmra.mxu0 %v210
      %v242 = vpop.f32.mrf.mxu0
      %v243 = vadd.f32 %v193, %v242
      %244 = vmatmul.f32.gmra.mxu0 %v213
      %v245 = vpop.f32.mrf.mxu0
      %v246 = vadd.f32 %v198, %v245
      %247 = vmatmul.f32.gmra.mxu0 %v216
      %v248 = vpop.f32.mrf.mxu0
      %v249 = vadd.f32 %v203, %v248
      %250 = vdwg.mxu0
      %v251 = vlaneseq
      %v252 = vand.u32 %v251, 127
      %v253 = vlaneseq
      %v254 = vshrl.u32 %v253, 7
      %v255 = vadd.s32 %v254, 8
      %v256 = vadd.s32 %v254, 16
      %v257 = vadd.s32 %v254, 24
      %v258 = vmul.u32 %v254, 49
      %v259 = vmul.u32 %v255, 49
      %v260 = vmul.u32 %v256, 49
      %v261 = vmul.u32 %v257, 49
      %v262 = vadd.s32 %v258, %v252
      %v263 = vadd.s32 %v259, %v252
      %v264 = vadd.s32 %v260, %v252
      %v265 = vadd.s32 %v261, %v252
      %v266 = vand.u32 %v262, 3
      %v267 = vand.u32 %v263, 3
      %v268 = vand.u32 %v264, 3
      %v269 = vand.u32 %v265, 3
      %v270 = vmul.f32 %v240, %v240
      %v271 = vmul.f32 %v243, %v243
      %v272 = vmul.f32 %v246, %v246
      %v273 = vmul.f32 %v249, %v249
      %278 = vrot.lane.b32.xlu0 %v270, 127
      %v279 = vpop.permute.xlu0 %278
      %280 = vrot.lane.b32.xlu0 %v271, 127
      %v281 = vpop.permute.xlu0 %280
      %282 = vrot.lane.b32.xlu0 %v272, 127
      %v283 = vpop.permute.xlu0 %282
      %284 = vrot.lane.b32.xlu0 %v273, 127
      %v285 = vpop.permute.xlu0 %284
      %290 = vrot.lane.b32.xlu0 %v270, 48
      %v291 = vpop.permute.xlu0 %290
      %292 = vrot.lane.b32.xlu0 %v271, 48
      %v293 = vpop.permute.xlu0 %292
      %294 = vrot.lane.b32.xlu0 %v272, 48
      %v295 = vpop.permute.xlu0 %294
      %296 = vrot.lane.b32.xlu0 %v273, 48
      %v297 = vpop.permute.xlu0 %296
      %vm302 = vcmask 392192
      %v303 = vsel %vm302, %v279, %v291
      %v304 = vsel %vm302, %v281, %v293
      %v305 = vsel %vm302, %v283, %v295
      %v306 = vsel %vm302, %v285, %v297
      %vm311 = vcmask 1046528
      %v312 = vrot.slane %v303, 1
      %v313 = vrot.slane %v304, 1
      %v314 = vsel %vm311, %v312, %v313
      %v315 = vrot.slane %v305, 1
      %v316 = vsel %vm311, %v313, %v315
      %v317 = vrot.slane %v306, 1
      %v318 = vsel %vm311, %v315, %v317
      %v324 = vsel %vm311, %v317, %v312
      %vm325 = vcmp.lt.s32.totalorder %v252, 48
      %v326 = vsel %vm325, %v303, %v314
      %v327 = vsel %vm325, %v304, %v316
      %v328 = vsel %vm325, %v305, %v318
      %v329 = vsel %vm325, %v306, %v324
      %v330 = vadd.f32 %v270, %v326
      %v331 = vadd.f32 %v271, %v327
      %v332 = vadd.f32 %v272, %v328
      %v333 = vadd.f32 %v273, %v329
      %338 = vrot.lane.b32.xlu0 %v330, 126
      %v339 = vpop.permute.xlu0 %338
      %340 = vrot.lane.b32.xlu0 %v331, 126
      %v341 = vpop.permute.xlu0 %340
      %342 = vrot.lane.b32.xlu0 %v332, 126
      %v343 = vpop.permute.xlu0 %342
      %344 = vrot.lane.b32.xlu0 %v333, 126
      %v345 = vpop.permute.xlu0 %344
      %350 = vrot.lane.b32.xlu0 %v330, 47
      %v351 = vpop.permute.xlu0 %350
      %352 = vrot.lane.b32.xlu0 %v331, 47
      %v353 = vpop.permute.xlu0 %352
      %354 = vrot.lane.b32.xlu0 %v332, 47
      %v355 = vpop.permute.xlu0 %354
      %356 = vrot.lane.b32.xlu0 %v333, 47
      %v357 = vpop.permute.xlu0 %356
      %vm362 = vcmask 384000
      %v363 = vsel %vm362, %v339, %v351
      %v364 = vsel %vm362, %v341, %v353
      %v365 = vsel %vm362, %v343, %v355
      %v366 = vsel %vm362, %v345, %v357
      %v371 = vrot.slane %v363, 1
      %v372 = vrot.slane %v364, 1
      %v373 = vsel %vm311, %v371, %v372
      %v374 = vrot.slane %v365, 1
      %v375 = vsel %vm311, %v372, %v374
      %v376 = vrot.slane %v366, 1
      %v377 = vsel %vm311, %v374, %v376
      %v383 = vsel %vm311, %v376, %v371
      %vm384 = vcmp.lt.s32.totalorder %v252, 47
      %v385 = vsel %vm384, %v363, %v373
      %v386 = vsel %vm384, %v364, %v375
      %v387 = vsel %vm384, %v365, %v377
      %v388 = vsel %vm384, %v366, %v383
      %v389 = vadd.f32 %v330, %v385
      %v390 = vadd.f32 %v331, %v386
      %v391 = vadd.f32 %v332, %v387
      %v392 = vadd.f32 %v333, %v388
      %vm393 = vcmp.eq.s32.totalorder %v266, 1
      %vm394 = vcmp.eq.s32.totalorder %v267, 1
      %vm395 = vcmp.eq.s32.totalorder %v268, 1
      %vm396 = vcmp.eq.s32.totalorder %v269, 1
      %401 = vrot.lane.b32.xlu0 %v389, 80
      %v402 = vpop.permute.xlu0 %401
      %403 = vrot.lane.b32.xlu0 %v390, 80
      %v404 = vpop.permute.xlu0 %403
      %405 = vrot.lane.b32.xlu0 %v391, 80
      %v406 = vpop.permute.xlu0 %405
      %407 = vrot.lane.b32.xlu0 %v392, 80
      %v408 = vpop.permute.xlu0 %407
      %413 = vrot.lane.b32.xlu0 %v389, 1
      %v414 = vpop.permute.xlu0 %413
      %415 = vrot.lane.b32.xlu0 %v390, 1
      %v416 = vpop.permute.xlu0 %415
      %417 = vrot.lane.b32.xlu0 %v391, 1
      %v418 = vpop.permute.xlu0 %417
      %419 = vrot.lane.b32.xlu0 %v392, 1
      %v420 = vpop.permute.xlu0 %419
      %vm425 = vcmask 7168
      %v426 = vsel %vm425, %v402, %v414
      %v427 = vsel %vm425, %v404, %v416
      %v428 = vsel %vm425, %v406, %v418
      %v429 = vsel %vm425, %v408, %v420
      %v431 = vrot.slane %v429, 7
      %vm436 = vcmask 1040384
      %v437 = vrot.slane %v426, 7
      %v438 = vrot.slane %v427, 7
      %v439 = vsel %vm436, %v437, %v438
      %v440 = vrot.slane %v428, 7
      %v441 = vsel %vm436, %v438, %v440
      %v442 = vsel %vm436, %v440, %v431
      %v447 = vsel %vm436, %v431, %v437
      %vm448 = vcmp.ge.s32.totalorder %v252, 1
      %v449 = vsel %vm448, %v426, %v447
      %v450 = vsel %vm448, %v427, %v439
      %v451 = vsel %vm448, %v428, %v441
      %v452 = vsel %vm448, %v429, %v442
      %v453 = vsel %vm393, %v449, %v389
      %v454 = vsel %vm394, %v450, %v390
      %v455 = vsel %vm395, %v451, %v391
      %v456 = vsel %vm396, %v452, %v392
      %vm457 = vcmp.eq.s32.totalorder %v266, 2
      %vm458 = vcmp.eq.s32.totalorder %v267, 2
      %vm459 = vcmp.eq.s32.totalorder %v268, 2
      %vm460 = vcmp.eq.s32.totalorder %v269, 2
      %461 = vrot.lane.b32.xlu0 %v389, 81
      %v462 = vpop.permute.xlu0 %461
      %463 = vrot.lane.b32.xlu0 %v390, 81
      %v464 = vpop.permute.xlu0 %463
      %465 = vrot.lane.b32.xlu0 %v391, 81
      %v466 = vpop.permute.xlu0 %465
      %467 = vrot.lane.b32.xlu0 %v392, 81
      %v468 = vpop.permute.xlu0 %467
      %473 = vrot.lane.b32.xlu0 %v389, 2
      %v474 = vpop.permute.xlu0 %473
      %475 = vrot.lane.b32.xlu0 %v390, 2
      %v476 = vpop.permute.xlu0 %475
      %477 = vrot.lane.b32.xlu0 %v391, 2
      %v478 = vpop.permute.xlu0 %477
      %479 = vrot.lane.b32.xlu0 %v392, 2
      %v480 = vpop.permute.xlu0 %479
      %vm485 = vcmask 15360
      %v486 = vsel %vm485, %v462, %v474
      %v487 = vsel %vm485, %v464, %v476
      %v488 = vsel %vm485, %v466, %v478
      %v489 = vsel %vm485, %v468, %v480
      %v491 = vrot.slane %v489, 7
      %v496 = vrot.slane %v486, 7
      %v497 = vrot.slane %v487, 7
      %v498 = vsel %vm436, %v496, %v497
      %v499 = vrot.slane %v488, 7
      %v500 = vsel %vm436, %v497, %v499
      %v501 = vsel %vm436, %v499, %v491
      %v506 = vsel %vm436, %v491, %v496
      %vm507 = vcmp.ge.s32.totalorder %v252, 2
      %v508 = vsel %vm507, %v486, %v506
      %v509 = vsel %vm507, %v487, %v498
      %v510 = vsel %vm507, %v488, %v500
      %v511 = vsel %vm507, %v489, %v501
      %v512 = vsel %vm457, %v508, %v453
      %v513 = vsel %vm458, %v509, %v454
      %v514 = vsel %vm459, %v510, %v455
      %v515 = vsel %vm460, %v511, %v456
      %vm516 = vcmp.eq.s32.totalorder %v266, 3
      %vm517 = vcmp.eq.s32.totalorder %v267, 3
      %vm518 = vcmp.eq.s32.totalorder %v268, 3
      %vm519 = vcmp.eq.s32.totalorder %v269, 3
      %520 = vrot.lane.b32.xlu0 %v389, 82
      %v521 = vpop.permute.xlu0 %520
      %522 = vrot.lane.b32.xlu0 %v390, 82
      %v523 = vpop.permute.xlu0 %522
      %524 = vrot.lane.b32.xlu0 %v391, 82
      %v525 = vpop.permute.xlu0 %524
      %526 = vrot.lane.b32.xlu0 %v392, 82
      %v527 = vpop.permute.xlu0 %526
      %532 = vrot.lane.b32.xlu0 %v389, 3
      %v533 = vpop.permute.xlu0 %532
      %534 = vrot.lane.b32.xlu0 %v390, 3
      %v535 = vpop.permute.xlu0 %534
      %536 = vrot.lane.b32.xlu0 %v391, 3
      %v537 = vpop.permute.xlu0 %536
      %538 = vrot.lane.b32.xlu0 %v392, 3
      %v539 = vpop.permute.xlu0 %538
      %vm544 = vcmask 23552
      %v545 = vsel %vm544, %v521, %v533
      %v546 = vsel %vm544, %v523, %v535
      %v547 = vsel %vm544, %v525, %v537
      %v548 = vsel %vm544, %v527, %v539
      %v550 = vrot.slane %v548, 7
      %v555 = vrot.slane %v545, 7
      %v556 = vrot.slane %v546, 7
      %v557 = vsel %vm436, %v555, %v556
      %v558 = vrot.slane %v547, 7
      %v559 = vsel %vm436, %v556, %v558
      %v560 = vsel %vm436, %v558, %v550
      %v565 = vsel %vm436, %v550, %v555
      %vm566 = vcmp.ge.s32.totalorder %v252, 3
      %v567 = vsel %vm566, %v545, %v565
      %v568 = vsel %vm566, %v546, %v557
      %v569 = vsel %vm566, %v547, %v559
      %v570 = vsel %vm566, %v548, %v560
      %v571 = vsel %vm516, %v567, %v512
      %v572 = vsel %vm517, %v568, %v513
      %v573 = vsel %vm518, %v569, %v514
      %v574 = vsel %vm519, %v570, %v515
      %v575 = vmul.f32 %v240, %v571
      %v576 = vmul.f32 %v243, %v572
      %v577 = vmul.f32 %v246, %v573
      %v578 = vmul.f32 %v249, %v574
      %v579 = vadd.f32 %v571, 1.0
      %v580 = vadd.f32 %v572, 1.0
      %v581 = vadd.f32 %v573, 1.0
      %v582 = vadd.f32 %v574, 1.0
      %v583 = vrsqrt.pop %v571
      %v584 = vmul.f32 %v583, %v571
      %v585 = vmul.f32 %v584, %v583
      %v586 = vmul.f32 0.5, %v585
      %v587 = vsub.f32 1.5, %v586
      %v588 = vmul.f32 %v583, %v587
      %v589 = vmul.f32 %v571, %v588
      %vm590 = vcmp.eq.f32.partialorder %v571, inf
      %v591 = vsel %vm590, %v571, %v589
      %vm592 = vcmp.eq.f32.partialorder %v571, 0.0
      %v593 = vand.u32 %v571, 2147483648
      %v594 = vsel %vm592, %v593, %v591
      %v595 = vrsqrt.pop %v572
      %v596 = vmul.f32 %v595, %v572
      %v597 = vmul.f32 %v596, %v595
      %v598 = vmul.f32 0.5, %v597
      %v599 = vsub.f32 1.5, %v598
      %v600 = vmul.f32 %v595, %v599
      %v601 = vmul.f32 %v572, %v600
      %vm602 = vcmp.eq.f32.partialorder %v572, inf
      %v603 = vsel %vm602, %v572, %v601
      %vm604 = vcmp.eq.f32.partialorder %v572, 0.0
      %v605 = vand.u32 %v572, 2147483648
      %v606 = vsel %vm604, %v605, %v603
      %v607 = vrsqrt.pop %v573
      %v608 = vmul.f32 %v607, %v573
      %v609 = vmul.f32 %v608, %v607
      %v610 = vmul.f32 0.5, %v609
      %v611 = vsub.f32 1.5, %v610
      %v612 = vmul.f32 %v607, %v611
      %v613 = vmul.f32 %v573, %v612
      %vm614 = vcmp.eq.f32.partialorder %v573, inf
      %v615 = vsel %vm614, %v573, %v613
      %vm616 = vcmp.eq.f32.partialorder %v573, 0.0
      %v617 = vand.u32 %v573, 2147483648
      %v618 = vsel %vm616, %v617, %v615
      %v619 = vrsqrt.pop %v574
      %v620 = vmul.f32 %v619, %v574
      %v621 = vmul.f32 %v620, %v619
      %v622 = vmul.f32 0.5, %v621
      %v623 = vsub.f32 1.5, %v622
      %v624 = vmul.f32 %v619, %v623
      %v625 = vmul.f32 %v574, %v624
      %vm626 = vcmp.eq.f32.partialorder %v574, inf
      %v627 = vsel %vm626, %v574, %v625
      %vm628 = vcmp.eq.f32.partialorder %v574, 0.0
      %v629 = vand.u32 %v574, 2147483648
      %v630 = vsel %vm628, %v629, %v627
      %v631 = vadd.f32 %v594, 1e-08
      %v632 = vadd.f32 %v606, 1e-08
      %v633 = vadd.f32 %v618, 1e-08
      %v634 = vadd.f32 %v630, 1e-08
      %v635 = vmul.f32 %v579, %v631
      %v636 = vmul.f32 %v580, %v632
      %v637 = vmul.f32 %v581, %v633
      %v638 = vmul.f32 %v582, %v634
      %v639 = vrcp.pop %v635
      %v640 = vmul.f32 %v635, %v639
      %v641 = vsub.f32 1.0, %v640
      %v642 = vmul.f32 %v639, %v641
      %v643 = vadd.f32 %v639, %v642
      %vm644 = vweird.f32 %v635
      %vm645 = vweird.f32 %v639
      %vm646 = vmor %vm644, %vm645
      %v647 = vsel %vm646, %v639, %v643
      %v648 = vand.u32 2147483647, %v635
      %vm649 = vcmp.eq.f32.partialorder %v648, 8.507059e+37
      %v650 = vand.u32 %v635, 2147483648
      %v651 = vor.u32 1.1754944e-38, %v650
      %v652 = vsel %vm649, %v651, %v647
      %v653 = vmul.f32 %v575, %v652
      %v654 = vrcp.pop %v636
      %v655 = vmul.f32 %v636, %v654
      %v656 = vsub.f32 1.0, %v655
      %v657 = vmul.f32 %v654, %v656
      %v658 = vadd.f32 %v654, %v657
      %vm659 = vweird.f32 %v636
      %vm660 = vweird.f32 %v654
      %vm661 = vmor %vm659, %vm660
      %v662 = vsel %vm661, %v654, %v658
      %v663 = vand.u32 2147483647, %v636
      %vm664 = vcmp.eq.f32.partialorder %v663, 8.507059e+37
      %v665 = vand.u32 %v636, 2147483648
      %v666 = vor.u32 1.1754944e-38, %v665
      %v667 = vsel %vm664, %v666, %v662
      %v668 = vmul.f32 %v576, %v667
      %v669 = vrcp.pop %v637
      %v670 = vmul.f32 %v637, %v669
      %v671 = vsub.f32 1.0, %v670
      %v672 = vmul.f32 %v669, %v671
      %v673 = vadd.f32 %v669, %v672
      %vm674 = vweird.f32 %v637
      %vm675 = vweird.f32 %v669
      %vm676 = vmor %vm674, %vm675
      %v677 = vsel %vm676, %v669, %v673
      %v678 = vand.u32 2147483647, %v637
      %vm679 = vcmp.eq.f32.partialorder %v678, 8.507059e+37
      %v680 = vand.u32 %v637, 2147483648
      %v681 = vor.u32 1.1754944e-38, %v680
      %v682 = vsel %vm679, %v681, %v677
      %v683 = vmul.f32 %v577, %v682
      %v684 = vrcp.pop %v638
      %v685 = vmul.f32 %v638, %v684
      %v686 = vsub.f32 1.0, %v685
      %v687 = vmul.f32 %v684, %v686
      %v688 = vadd.f32 %v684, %v687
      %vm689 = vweird.f32 %v638
      %vm690 = vweird.f32 %v684
      %vm691 = vmor %vm689, %vm690
      %v692 = vsel %vm691, %v684, %v688
      %v693 = vand.u32 2147483647, %v638
      %vm694 = vcmp.eq.f32.partialorder %v693, 8.507059e+37
      %v695 = vand.u32 %v638, 2147483648
      %v696 = vor.u32 1.1754944e-38, %v695
      %v697 = vsel %vm694, %v696, %v692
      %v698 = vmul.f32 %v578, %v697
      %vm699 = vcmask 400384
      %700 = vst.msk [vmem:[%s170] sm:$0xff] %vm699, %v653
      %701 = vst.msk [vmem:[%s170 + $0x8] sm:$0xff] %vm699, %v668
      %702 = vst.msk [vmem:[%s170 + $0x10] sm:$0xff] %vm699, %v683
      %703 = vst.msk [vmem:[%s170 + $0x18] sm:$0xff] %vm699, %v698
      %s704 = smul.u32 4, %s14
      %p705 = scmp.lt.s32.totalorder %s704, 7
      %s706 = scalar_select %p705, %s704, 7
      %s707 = smul.addr %s706, 8
      %s708 = scalar_lea.vmem %s3, %s707
      // Predicated region
      $region33: #{primary_caps_forward.1} parent=31 // pred_check
        %p709 = pneg %p100
      $region34: #{primary_caps_forward.1} parent=31 // pred_check_branch
        %711 = sbr.rel (%p709) target = $region36
      $region35: #{primary_caps_forward.1} parent=31 // pred_region
        %s712 = smul.u32 4, %s14
      $region36: #{primary_caps_forward.1} parent=31 // pred_fallthru
        _
    $region32: #{primary_caps_forward.1} parent=5 // pred_fallthru
      _
    %p713 = scmp.le.s32.totalorder 2, %s9
    // Predicated region
    $region37: #{primary_caps_forward.1} parent=5 // pred_check
      %p714 = pneg %p713
    $region38: #{primary_caps_forward.1} parent=5 // pred_check_branch
      %716 = sbr.rel (%p714) target = $region40
    $region39: #{primary_caps_forward.1} parent=5 // pred_region
      %s717 = ssub.s32 %s9, 2
      // Predicated region
      $region41: #{primary_caps_forward.1} parent=39 // pred_check
        %p718 = pneg %p106
      $region42: #{primary_caps_forward.1} parent=39 // pred_check_branch
        %720 = sbr.rel (%p718) target = $region44
      $region43: #{primary_caps_forward.1} parent=39 // pred_region
        %s721 = smul.u32 4, %s15
        %p722 = scmp.lt.s32.totalorder %s721, 7
        %s723 = scalar_select %p722, %s721, 7
        %s724 = smul.addr %s723, 8
        %s725 = scalar_lea.vmem %s3, %s724
      $region44: #{primary_caps_forward.1} parent=39 // pred_fallthru
        _
    $region40: #{primary_caps_forward.1} parent=5 // pred_fallthru
      _
  $region6: #{primary_caps_forward.1} parent=0 // loop_footer
    %s13 = sadd.s32 1, %s9
  $region7: #{primary_caps_forward.1} parent=0 // loop_footer_branch
    %8 = sbr.rel target = $region3
  $region8: #{primary_caps_forward.1} parent=0 // loop_exit
    _

</llo_original>
